<compile_context>
chip_gen: v7x
topology: tpu7x:2x2x1
jax: 0.10.0
libtpu: 0.0.40
codegen_flags: <defaults>
</compile_context>

<pallas_src>
import functools

import numpy as np
import jax
import jax.numpy as jnp
from jax.experimental import pallas as pl
from jax.experimental.pallas import tpu as pltpu


_LANE = 128  # lane width of every slab; keeps the rows axis maximally flexible


def _elbo_partial_kernel(x_ref, xmu_ref, lsq_ref, zmu_ref, zlv_ref, out_ref,
                         *, eps):
    """One grid step: lane-dense partial sum of the data-dependent loss terms.

    x/xmu/lsq blocks are [R, L]; zmu/zlv blocks are [D*R, L] (slab path) or the
    full arrays (fallback path).  Output block is [1, 1, L].
    """
    # ---- reconstruction NLL (data-dependent part) --------------------------
    x = x_ref[...].astype(jnp.float32)
    xmu = xmu_ref[...].astype(jnp.float32)
    lsq = lsq_ref[...].astype(jnp.float32)      # log sigma^2 (diagonal)

    r = x - xmu
    # Exact 1/(sigma^2 + eps) — matches the PyTorch module bit-for-bit in f32.
    rec = 0.5 * (r * r) / (jnp.exp(lsq) + eps) + 0.25 * lsq

    # ---- KL to unit normal (data-dependent part) ----------------------------
    zmu = zmu_ref[...].astype(jnp.float32)
    zlv = zlv_ref[...].astype(jnp.float32)
    lat = zmu * zmu + jnp.exp(zlv) - zlv

    # Single sublane reduce per array; lanes stay unreduced (lane-dense store).
    partial = (jnp.sum(rec, axis=0, keepdims=True)
               + 0.5 * jnp.sum(lat, axis=0, keepdims=True))     # [1, L]
    out_ref[...] = partial[None]                                 # [1, 1, L]


def _detect_vmem_capacity_bytes():
    """Best-effort physical VMEM size; falls back to the v7x minimum (64 MiB)."""
    try:
        cap = int(pltpu.get_tpu_info().vmem_capacity_bytes)
        if cap > 0:
            return cap
    except Exception:
        pass
    try:
        kind = jax.devices()[0].device_kind.lower()
        if any(tag in kind for tag in ("v4", "v5", "v6")):
            return 128 * 1024 * 1024
    except Exception:
        pass
    return 64 * 1024 * 1024


def _divisors(n):
    out = set()
    i = 1
    while i * i <= n:
        if n % i == 0:
            out.add(i)
            out.add(n // i)
        i += 1
    return out


def _pick_row_tile(rx, d, itemsize, vmem_limit):
    """Largest multiple-of-8 divisor of `rx` whose grid step fits the budget.

    Per step we DMA (3 + 2*d) * t * _LANE * itemsize bytes (x/xmu/lsq use t
    rows, zmu/zlv use d*t rows).  Returns 0 if no valid tile exists (caller
    falls back to a single full-array block).
    """
    per_row = (3 + 2 * d) * _LANE * itemsize
    # Double-buffered input blocks take <= ~40% of the scoped VMEM limit; the
    # rest is headroom for f32 intermediates, the output and compiler scratch.
    step_budget = int(0.40 * vmem_limit) // 2
    max_rows = step_budget // per_row
    # Keep the largest single block (the z block) at a size Mosaic handles
    # comfortably as one vector value (~4 MiB in the native dtype).
    per_block_cap = 4 * 1024 * 1024
    max_rows = min(max_rows, per_block_cap // (max(d, 1) * _LANE * itemsize))
    # Prefer >= 2 grid steps: v7x megacore sharding + DMA/compute pipelining.
    if rx >= 16:
        max_rows = min(max_rows, rx // 2)
    cands = [t for t in _divisors(rx) if t % 8 == 0 and t <= max_rows]
    return max(cands) if cands else 0


def annealed_diagonal_elbo_loss(x, x_mu, x_logvar, z_mu, z_logvar,
                                *, offdiag_passed=True, eps=1e-7):
    """Forward pass of AnnealedDiagonalElboLoss. Returns a scalar loss."""
    B, C, H, W = x.shape
    assert C == 1, "Reference module only works with C=1 (grayscale)."
    D = z_mu.shape[1]
    HW = H * W
    n_x = B * HW
    n_z = B * D * HW

    # Free (view-only) reshapes; NO dtype casts here — the kernel upcasts.
    lsq = x_logvar[:, 0] if offdiag_passed else x_logvar

    vmem_cap = _detect_vmem_capacity_bytes()
    # <=48 MiB scoped on v7x (64 MiB physical); up to 96 MiB on v5e/v6e.
    vmem_limit = min(int(0.75 * vmem_cap), 96 * 1024 * 1024)

    itemsize = max(a.dtype.itemsize for a in (x, x_mu, x_logvar, z_mu, z_logvar))

    kernel = functools.partial(_elbo_partial_kernel, eps=float(eps))
    cost = pl.CostEstimate(
        flops=int(8 * n_x + 6 * n_z),
        transcendentals=int(n_x + n_z),
        bytes_accessed=int((3 * n_x + 2 * n_z) * itemsize + n_x * 4),
    )

    row_tile = 0
    if n_x % _LANE == 0:
        rx = n_x // _LANE
        row_tile = _pick_row_tile(rx, D, itemsize, vmem_limit)

    if row_tile:
        # ---- main path: dense [rows, 128] slabs, 1-D parallel grid ----------
        num_tiles = rx // row_tile
        z_row_tile = D * row_tile
        x2 = x.reshape(rx, _LANE)
        xmu2 = x_mu.reshape(rx, _LANE)
        lsq2 = lsq.reshape(rx, _LANE)
        zmu2 = z_mu.reshape(D * rx, _LANE)
        zlv2 = z_logvar.reshape(D * rx, _LANE)

        partials = pl.pallas_call(
            kernel,
            out_shape=jax.ShapeDtypeStruct((num_tiles, 1, _LANE), jnp.float32),
            grid=(num_tiles,),
            in_specs=[
                pl.BlockSpec((row_tile, _LANE), lambda i: (i, 0)),
                pl.BlockSpec((row_tile, _LANE), lambda i: (i, 0)),
                pl.BlockSpec((row_tile, _LANE), lambda i: (i, 0)),
                pl.BlockSpec((z_row_tile, _LANE), lambda i: (i, 0)),
                pl.BlockSpec((z_row_tile, _LANE), lambda i: (i, 0)),
            ],
            out_specs=pl.BlockSpec((1, 1, _LANE), lambda i: (i, 0, 0)),
            compiler_params=pltpu.CompilerParams(
                dimension_semantics=("parallel",),
                vmem_limit_bytes=vmem_limit,
            ),
            cost_estimate=cost,
        )(x2, xmu2, lsq2, zmu2, zlv2)
    else:
        # ---- fallback: B*H*W not a multiple of 8*128 — one full-array block.
        # Correct (no padding; zero-padding would corrupt the KL term) but
        # unpipelined; only intended for small / oddly-shaped problems.
        x2 = x.reshape(B, HW)
        xmu2 = x_mu.reshape(B, HW)
        lsq2 = lsq.reshape(B, HW)
        zmu2 = z_mu.reshape(B * D, HW)
        zlv2 = z_logvar.reshape(B * D, HW)

        partials = pl.pallas_call(
            kernel,
            out_shape=jax.ShapeDtypeStruct((1, 1, HW), jnp.float32),
            grid=(1,),
            in_specs=[
                pl.BlockSpec((B, HW), lambda i: (0, 0)),
                pl.BlockSpec((B, HW), lambda i: (0, 0)),
                pl.BlockSpec((B, HW), lambda i: (0, 0)),
                pl.BlockSpec((B * D, HW), lambda i: (0, 0)),
                pl.BlockSpec((B * D, HW), lambda i: (0, 0)),
            ],
            out_specs=pl.BlockSpec((1, 1, HW), lambda i: (0, 0, 0)),
            compiler_params=pltpu.CompilerParams(
                dimension_semantics=("arbitrary",),
                vmem_limit_bytes=vmem_limit,
            ),
            cost_estimate=cost,
        )(x2, xmu2, lsq2, zmu2, zlv2)

    # Tiny final reduction + per-batch constants in plain JAX.
    total = jnp.sum(partials, dtype=jnp.float32)
    const = 0.5 * jnp.float32(HW) * jnp.log(jnp.float32(2.0 * np.pi))
    loss = total / jnp.float32(B) + const - 0.5 * jnp.float32(D * HW)
    return loss


def _reference_loss(x, x_mu, x_logvar, z_mu, z_logvar, eps=1e-7):
    """Pure-JAX reference matching the PyTorch module (offdiag_passed=True)."""
    B, C, H, W = x.shape
    D = z_mu.shape[1]
    r = (x - x_mu).reshape(B, -1).astype(jnp.float32)
    lsq = x_logvar[:, 0].reshape(B, -1).astype(jnp.float32)
    sigma_sq = jnp.exp(lsq)
    const = H * W * jnp.log(jnp.float32(2.0 * np.pi))
    nll = 0.5 * (jnp.einsum('bi,bi->b', r, r / (sigma_sq + eps))
                 + 0.5 * jnp.sum(lsq, axis=1)) + 0.5 * const
    zmu = z_mu.astype(jnp.float32)
    zlv = z_logvar.astype(jnp.float32)
    var = jnp.exp(zlv)
    kl = 0.5 * (jnp.einsum('bihw,bihw->bhw', zmu, zmu)
                + jnp.sum(var, axis=1) - jnp.sum(zlv, axis=1) - D)
    kl = kl.sum(axis=(1, 2))
    return jnp.mean(nll) + jnp.mean(kl)


if __name__ == "__main__":
    # Small shapes that still exercise the tiled (multi-step, parallel) path:
    # B*H*W = 2048 -> 16 slab rows -> row tile 8 -> grid=(2,).
    B, C, H, W, D = 2, 1, 32, 32, 4
    key = jax.random.PRNGKey(0)
    k1, k2, k3, k4, k5 = jax.random.split(key, 5)

    x = jax.random.normal(k1, (B, C, H, W), dtype=jnp.float32)
    x_mu = jax.random.normal(k2, (B, C, H, W), dtype=jnp.float32)
    x_logvar = 0.1 * jax.random.normal(k3, (B, C, H, W), dtype=jnp.float32)
    z_mu = jax.random.normal(k4, (B, D, H, W), dtype=jnp.float32)
    z_logvar = 0.1 * jax.random.normal(k5, (B, D, H, W), dtype=jnp.float32)

    loss = annealed_diagonal_elbo_loss(x, x_mu, x_logvar, z_mu, z_logvar)
    loss = jax.block_until_ready(loss)

    ref = jax.block_until_ready(_reference_loss(x, x_mu, x_logvar, z_mu, z_logvar))
    np.testing.assert_allclose(np.asarray(loss), np.asarray(ref),
                               rtol=1e-4, atol=1e-3)

    print("KERNEL_OK")
</pallas_src>

<mosaic_0001>
module attributes {stable_mosaic.version = 11 : i64} {
  func.func @_elbo_partial_kernel(%arg0: i32, %arg1: memref<8x128xf32, #tpu.memory_space<vmem>>, %arg2: memref<8x128xf32, #tpu.memory_space<vmem>>, %arg3: memref<8x128xf32, #tpu.memory_space<vmem>>, %arg4: memref<32x128xf32, #tpu.memory_space<vmem>>, %arg5: memref<32x128xf32, #tpu.memory_space<vmem>>, %arg6: memref<1x1x128xf32, #tpu.memory_space<vmem>>) attributes {dimension_semantics = [#tpu.dimension_semantics<parallel>], iteration_bounds = array<i64: 2>, scalar_prefetch = 0 : i64, scratch_operands = 0 : i64, tpu.core_type = #tpu.core_type<tc>, window_params = [{transform_indices = @transform_0, window_bounds = array<i64: 8, 128>}, {transform_indices = @transform_1, window_bounds = array<i64: 8, 128>}, {transform_indices = @transform_2, window_bounds = array<i64: 8, 128>}, {transform_indices = @transform_3, window_bounds = array<i64: 32, 128>}, {transform_indices = @transform_4, window_bounds = array<i64: 32, 128>}, {transform_indices = @transform_5, window_bounds = array<i64: 1, 1, 128>}]} {
    %c0 = arith.constant 0 : index
    %c0_0 = arith.constant 0 : index
    %0 = vector.load %arg1[%c0, %c0_0] : memref<8x128xf32, #tpu.memory_space<vmem>>, vector<8x128xf32>
    %c0_1 = arith.constant 0 : index
    %c0_2 = arith.constant 0 : index
    %1 = vector.load %arg2[%c0_1, %c0_2] : memref<8x128xf32, #tpu.memory_space<vmem>>, vector<8x128xf32>
    %c0_3 = arith.constant 0 : index
    %c0_4 = arith.constant 0 : index
    %2 = vector.load %arg3[%c0_3, %c0_4] : memref<8x128xf32, #tpu.memory_space<vmem>>, vector<8x128xf32>
    %3 = arith.subf %0, %1 : vector<8x128xf32>
    %4 = arith.mulf %3, %3 : vector<8x128xf32>
    %cst = arith.constant 5.000000e-01 : f32
    %5 = vector.broadcast %cst : f32 to vector<8x128xf32>
    %6 = arith.mulf %5, %4 : vector<8x128xf32>
    %7 = math.exp %2 : vector<8x128xf32>
    %cst_5 = arith.constant 1.000000e-07 : f32
    %8 = vector.broadcast %cst_5 : f32 to vector<8x128xf32>
    %9 = arith.addf %7, %8 : vector<8x128xf32>
    %10 = arith.divf %6, %9 : vector<8x128xf32>
    %cst_6 = arith.constant 2.500000e-01 : f32
    %11 = vector.broadcast %cst_6 : f32 to vector<8x128xf32>
    %12 = arith.mulf %11, %2 : vector<8x128xf32>
    %13 = arith.addf %10, %12 : vector<8x128xf32>
    %c0_7 = arith.constant 0 : index
    %c0_8 = arith.constant 0 : index
    %14 = vector.load %arg4[%c0_7, %c0_8] : memref<32x128xf32, #tpu.memory_space<vmem>>, vector<32x128xf32>
    %c0_9 = arith.constant 0 : index
    %c0_10 = arith.constant 0 : index
    %15 = vector.load %arg5[%c0_9, %c0_10] : memref<32x128xf32, #tpu.memory_space<vmem>>, vector<32x128xf32>
    %16 = arith.mulf %14, %14 : vector<32x128xf32>
    %17 = math.exp %15 : vector<32x128xf32>
    %18 = arith.addf %16, %17 : vector<32x128xf32>
    %19 = arith.subf %18, %15 : vector<32x128xf32>
    %cst_11 = arith.constant dense<0.000000e+00> : vector<128xf32>
    %20 = vector.multi_reduction <add>, %13, %cst_11 [0] : vector<8x128xf32> to vector<128xf32>
    %21 = vector.shape_cast %20 : vector<128xf32> to vector<1x128xf32>
    %cst_12 = arith.constant dense<0.000000e+00> : vector<128xf32>
    %22 = vector.multi_reduction <add>, %19, %cst_12 [0] : vector<32x128xf32> to vector<128xf32>
    %23 = vector.shape_cast %22 : vector<128xf32> to vector<1x128xf32>
    %cst_13 = arith.constant 5.000000e-01 : f32
    %24 = vector.broadcast %cst_13 : f32 to vector<1x128xf32>
    %25 = arith.mulf %24, %23 : vector<1x128xf32>
    %26 = arith.addf %21, %25 : vector<1x128xf32>
    %27 = vector.shape_cast %26 : vector<1x128xf32> to vector<1x1x128xf32>
    %c0_14 = arith.constant 0 : index
    %c0_15 = arith.constant 0 : index
    %c0_16 = arith.constant 0 : index
    %28 = vector.load %arg6[%c0_14, %c0_15, %c0_16] : memref<1x1x128xf32, #tpu.memory_space<vmem>>, vector<1x1x128xf32>
    tpu.vector_store %arg6[%c0_14, %c0_15, %c0_16], %27 {strides = array<i32>} : memref<1x1x128xf32, #tpu.memory_space<vmem>>, vector<1x1x128xf32>,
    return
  }
  func.func @transform_0(%arg0: i32) -> (i32, i32) {
    %c0_i32 = arith.constant 0 : i32
    %c0_i32_0 = arith.constant 0 : i32
    return %arg0, %c0_i32 : i32, i32
  }
  func.func @transform_1(%arg0: i32) -> (i32, i32) {
    %c0_i32 = arith.constant 0 : i32
    %c0_i32_0 = arith.constant 0 : i32
    return %arg0, %c0_i32 : i32, i32
  }
  func.func @transform_2(%arg0: i32) -> (i32, i32) {
    %c0_i32 = arith.constant 0 : i32
    %c0_i32_0 = arith.constant 0 : i32
    return %arg0, %c0_i32 : i32, i32
  }
  func.func @transform_3(%arg0: i32) -> (i32, i32) {
    %c0_i32 = arith.constant 0 : i32
    %c0_i32_0 = arith.constant 0 : i32
    return %arg0, %c0_i32 : i32, i32
  }
  func.func @transform_4(%arg0: i32) -> (i32, i32) {
    %c0_i32 = arith.constant 0 : i32
    %c0_i32_0 = arith.constant 0 : i32
    return %arg0, %c0_i32 : i32, i32
  }
  func.func @transform_5(%arg0: i32) -> (i32, i32, i32) {
    %c0_i32 = arith.constant 0 : i32
    %c0_i32_0 = arith.constant 0 : i32
    %c0_i32_1 = arith.constant 0 : i32
    return %arg0, %c0_i32, %c0_i32_0 : i32, i32, i32
  }
}

</mosaic_0001>

<llo_original>
// kernel: tpu_custom_call.1
$region0: #{tpu_custom_call.1}
  #allocation0 [shape = 'u32[]', space=smem, size = 0x4, offset = 0x4, fixed_abs, tag = 'smem constant byte address 0x4 - core index']
  #allocation1 [shape = 'u32[144,128]{1,0:T(1,128)}', space=vmem, size = 0x12000, scoped, tag = 'internal scratch']
  %s0 = inlined_call_operand.hbm [shape: f32[16,128], index: 0, kind: input, shape index: {}]
  %s1 = inlined_call_operand.hbm [shape: f32[16,128], index: 1, kind: input, shape index: {}]
  %s2 = inlined_call_operand.hbm [shape: f32[16,128], index: 2, kind: input, shape index: {}]
  %s3 = inlined_call_operand.hbm [shape: f32[64,128], index: 3, kind: input, shape index: {}]
  %s4 = inlined_call_operand.hbm [shape: f32[64,128], index: 4, kind: input, shape index: {}]
  %s5 = inlined_call_operand.hbm [shape: f32[2,1,128], index: 5, kind: output, shape index: {}]
  %s6 = sld [smem:[#allocation0]]
  $region73: #{tpu_custom_call.1} parent=0
    _
  %s8 = ssub.s32 1, %s6
  %s9 = scalar_select 0, %s8, %s6
  $region1: #{tpu_custom_call.1} parent=0
    #allocation2 [shape = 'u8[8192]{0}', space=vmem, size = 0x2000, scoped, tag = 'input window, operand 0']
    #allocation3 [shape = 's32[2]{0}', space=sflag, size = 0x8, scoped, tag = 'scoped memory for tpu_custom_call.1']
    #allocation4 [shape = 's32[2]{0}', space=sflag, size = 0x8, scoped, tag = 'scoped memory for tpu_custom_call.1']
    #allocation5 [shape = 'u8[8192]{0}', space=vmem, size = 0x2000, scoped, tag = 'input window, operand 1']
    #allocation6 [shape = 's32[2]{0}', space=sflag, size = 0x8, scoped, tag = 'scoped memory for tpu_custom_call.1']
    #allocation7 [shape = 'u8[8192]{0}', space=vmem, size = 0x2000, scoped, tag = 'input window, operand 2']
    #allocation8 [shape = 'u8[32768]{0}', space=vmem, size = 0x8000, scoped, tag = 'input window, operand 3']
    #allocation9 [shape = 's32[2]{0}', space=sflag, size = 0x8, scoped, tag = 'scoped memory for tpu_custom_call.1']
    #allocation10 [shape = 'u8[32768]{0}', space=vmem, size = 0x8000, scoped, tag = 'input window, operand 4']
    #allocation11 [shape = 'u8[1024]{0}', space=vmem, size = 0x400, scoped, tag = 'output window, operand 0']
    %10 = vsyncpa [#allocation3], 0
    %s11 = scalar_lea.sflag [#allocation3], 1
    %12 = vsyncpa %s11, 0
    %13 = vsyncpa [#allocation6], 0
    %s14 = scalar_lea.sflag [#allocation6], 1
    %15 = vsyncpa %s14, 0
    %16 = vsyncpa [#allocation9], 0
    %s17 = scalar_lea.sflag [#allocation9], 1
    %18 = vsyncpa %s17, 0
    %19 = vsyncpa [#allocation4], 0
    %s20 = scalar_lea.sflag [#allocation4], 1
    %21 = vsyncpa %s20, 0
    loop: start=0, step=1, limit=4
    $region2: #{tpu_custom_call.1} parent=1 // loop_pre_header
      _
    $region3: #{tpu_custom_call.1} parent=1 // loop_header
      %s23 = sphi 0, %s27
      %p24 = scmp.ge.s32.totalorder %s23, 4
      %s33 = sphi 0, %s35
      %s36 = sphi 0, %s33
      %s37 = sphi 0, %s36
      %s53 = sphi 0, %s37
      %s59 = sphi 0, %s61
      %s62 = sphi 0, %s59
      %s63 = sphi 0, %s62
      %s79 = sphi 0, %s63
      %s85 = sphi 0, %s87
      %s88 = sphi 0, %s85
      %s89 = sphi 0, %s88
      %s105 = sphi 0, %s89
      %s111 = sphi 0, %s113
      %s114 = sphi 0, %s111
      %s115 = sphi 0, %s114
      %s131 = sphi 0, %s115
      %s137 = sphi 0, %s139
      %s140 = sphi 0, %s137
      %s141 = sphi 0, %s140
      %s157 = sphi 0, %s141
      %s163 = sphi 0, %s165
      %s166 = sphi 0, %s163
      %s167 = sphi 0, %s166
      %s183 = sphi 0, %s167
    $region4: #{tpu_custom_call.1} parent=1 // loop_header_branch
      %26 = sbr.rel (%p24) target = $region8
    $region5: #{tpu_custom_call.1} parent=1 // loop_body
      %s28 = ssub.s32 %s23, 1
      %s29 = ssub.s32 %s23, 2
      %s30 = sadd.s32 %s23, 1
      %s31 = ssub.s32 %s23, %s30
      %p32 = scmp.eq.s32.totalorder %s31, 0
      %s34 = sadd.s32 %s33, 1
      %s35 = scalar_select %p32, %s33, %s34
      %p38 = pneg %p32
      %p39 = scmp.eq.s32.totalorder %s23, 1
      %p40 = por %p38, %p39
      %p41 = scmp.ne.s32.totalorder %s33, %s36
      %p42 = scmp.eq.s32.totalorder %s23, 0
      %p43 = por %p41, %p42
      %p44 = scmp.ne.s32.totalorder %s33, %s36
      %p45 = scmp.eq.s32.totalorder %s28, 1
      %p46 = por %p44, %p45
      %p47 = scmp.ne.s32.totalorder %s36, %s37
      %p48 = scmp.eq.s32.totalorder %s28, 0
      %p49 = por %p47, %p48
      %p50 = scmp.ne.s32.totalorder %s36, %s37
      %p51 = scmp.eq.s32.totalorder %s29, 1
      %p52 = por %p50, %p51
      %p54 = scmp.ne.s32.totalorder %s37, %s53
      %p55 = scmp.eq.s32.totalorder %s29, 0
      %p56 = por %p54, %p55
      %s57 = ssub.s32 %s23, %s30
      %p58 = scmp.eq.s32.totalorder %s57, 0
      %s60 = sadd.s32 %s59, 1
      %s61 = scalar_select %p58, %s59, %s60
      %p64 = pneg %p58
      %p65 = scmp.eq.s32.totalorder %s23, 1
      %p66 = por %p64, %p65
      %p67 = scmp.ne.s32.totalorder %s59, %s62
      %p68 = scmp.eq.s32.totalorder %s23, 0
      %p69 = por %p67, %p68
      %p70 = scmp.ne.s32.totalorder %s59, %s62
      %p71 = scmp.eq.s32.totalorder %s28, 1
      %p72 = por %p70, %p71
      %p73 = scmp.ne.s32.totalorder %s62, %s63
      %p74 = scmp.eq.s32.totalorder %s28, 0
      %p75 = por %p73, %p74
      %p76 = scmp.ne.s32.totalorder %s62, %s63
      %p77 = scmp.eq.s32.totalorder %s29, 1
      %p78 = por %p76, %p77
      %p80 = scmp.ne.s32.totalorder %s63, %s79
      %p81 = scmp.eq.s32.totalorder %s29, 0
      %p82 = por %p80, %p81
      %s83 = ssub.s32 %s23, %s30
      %p84 = scmp.eq.s32.totalorder %s83, 0
      %s86 = sadd.s32 %s85, 1
      %s87 = scalar_select %p84, %s85, %s86
      %p90 = pneg %p84
      %p91 = scmp.eq.s32.totalorder %s23, 1
      %p92 = por %p90, %p91
      %p93 = scmp.ne.s32.totalorder %s85, %s88
      %p94 = scmp.eq.s32.totalorder %s23, 0
      %p95 = por %p93, %p94
      %p96 = scmp.ne.s32.totalorder %s85, %s88
      %p97 = scmp.eq.s32.totalorder %s28, 1
      %p98 = por %p96, %p97
      %p99 = scmp.ne.s32.totalorder %s88, %s89
      %p100 = scmp.eq.s32.totalorder %s28, 0
      %p101 = por %p99, %p100
      %p102 = scmp.ne.s32.totalorder %s88, %s89
      %p103 = scmp.eq.s32.totalorder %s29, 1
      %p104 = por %p102, %p103
      %p106 = scmp.ne.s32.totalorder %s89, %s105
      %p107 = scmp.eq.s32.totalorder %s29, 0
      %p108 = por %p106, %p107
      %s109 = ssub.s32 %s23, %s30
      %p110 = scmp.eq.s32.totalorder %s109, 0
      %s112 = sadd.s32 %s111, 1
      %s113 = scalar_select %p110, %s111, %s112
      %p116 = pneg %p110
      %p117 = scmp.eq.s32.totalorder %s23, 1
      %p118 = por %p116, %p117
      %p119 = scmp.ne.s32.totalorder %s111, %s114
      %p120 = scmp.eq.s32.totalorder %s23, 0
      %p121 = por %p119, %p120
      %p122 = scmp.ne.s32.totalorder %s111, %s114
      %p123 = scmp.eq.s32.totalorder %s28, 1
      %p124 = por %p122, %p123
      %p125 = scmp.ne.s32.totalorder %s114, %s115
      %p126 = scmp.eq.s32.totalorder %s28, 0
      %p127 = por %p125, %p126
      %p128 = scmp.ne.s32.totalorder %s114, %s115
      %p129 = scmp.eq.s32.totalorder %s29, 1
      %p130 = por %p128, %p129
      %p132 = scmp.ne.s32.totalorder %s115, %s131
      %p133 = scmp.eq.s32.totalorder %s29, 0
      %p134 = por %p132, %p133
      %s135 = ssub.s32 %s23, %s30
      %p136 = scmp.eq.s32.totalorder %s135, 0
      %s138 = sadd.s32 %s137, 1
      %s139 = scalar_select %p136, %s137, %s138
      %p142 = pneg %p136
      %p143 = scmp.eq.s32.totalorder %s23, 1
      %p144 = por %p142, %p143
      %p145 = scmp.ne.s32.totalorder %s137, %s140
      %p146 = scmp.eq.s32.totalorder %s23, 0
      %p147 = por %p145, %p146
      %p148 = scmp.ne.s32.totalorder %s137, %s140
      %p149 = scmp.eq.s32.totalorder %s28, 1
      %p150 = por %p148, %p149
      %p151 = scmp.ne.s32.totalorder %s140, %s141
      %p152 = scmp.eq.s32.totalorder %s28, 0
      %p153 = por %p151, %p152
      %p154 = scmp.ne.s32.totalorder %s140, %s141
      %p155 = scmp.eq.s32.totalorder %s29, 1
      %p156 = por %p154, %p155
      %p158 = scmp.ne.s32.totalorder %s141, %s157
      %p159 = scmp.eq.s32.totalorder %s29, 0
      %p160 = por %p158, %p159
      %s161 = ssub.s32 %s23, %s30
      %p162 = scmp.eq.s32.totalorder %s161, 0
      %s164 = sadd.s32 %s163, 1
      %s165 = scalar_select %p162, %s163, %s164
      %p168 = pneg %p162
      %p169 = scmp.eq.s32.totalorder %s23, 1
      %p170 = por %p168, %p169
      %p171 = scmp.ne.s32.totalorder %s163, %s166
      %p172 = scmp.eq.s32.totalorder %s23, 0
      %p173 = por %p171, %p172
      %p174 = scmp.ne.s32.totalorder %s163, %s166
      %p175 = scmp.eq.s32.totalorder %s28, 1
      %p176 = por %p174, %p175
      %p177 = scmp.ne.s32.totalorder %s166, %s167
      %p178 = scmp.eq.s32.totalorder %s28, 0
      %p179 = por %p177, %p178
      %p180 = scmp.ne.s32.totalorder %s166, %s167
      %p181 = scmp.eq.s32.totalorder %s29, 1
      %p182 = por %p180, %p181
      %p184 = scmp.ne.s32.totalorder %s167, %s183
      %p185 = scmp.eq.s32.totalorder %s29, 0
      %p186 = por %p184, %p185
      %p187 = scmp.le.s32.totalorder 1, %s23
      %p188 = scmp.lt.s32.totalorder %s23, 3
      %p189 = pnand %p187, %p188
      %p190 = pneg %p189
      // Predicated region
      $region9: #{tpu_custom_call.1} parent=5 // pred_check
        _
      $region10: #{tpu_custom_call.1} parent=5 // pred_check_branch
        %192 = sbr.rel (%p189) target = $region12
      $region11: #{tpu_custom_call.1} parent=5 // pred_region
        %s193 = ssub.s32 %s23, 1
      $region12: #{tpu_custom_call.1} parent=5 // pred_fallthru
        _
      %p194 = scmp.lt.s32.totalorder %s23, 2
      // Predicated region
      $region13: #{tpu_custom_call.1} parent=5 // pred_check
        %p195 = pneg %p194
      $region14: #{tpu_custom_call.1} parent=5 // pred_check_branch
        %197 = sbr.rel (%p195) target = $region16
      $region15: #{tpu_custom_call.1} parent=5 // pred_region
        // Predicated region
        $region17: #{tpu_custom_call.1} parent=15 // pred_check
          %p198 = pneg %p43
        $region18: #{tpu_custom_call.1} parent=15 // pred_check_branch
          %200 = sbr.rel (%p198) target = $region20
        $region19: #{tpu_custom_call.1} parent=15 // pred_region
          %s201 = sand.u32 %s33, 1
          %s202 = scalar_lea.sflag [#allocation3], %s201
          %s203 = sand.u32 %s33, 1
          %s204 = smul.addr %s203, 8
          %s205 = scalar_lea.vmem [#allocation2], %s204
          %s207 = ssub.s32 128, 128
          %208 = vsyncadd %s202, %s207
          %s209 = smul.addr %s23, 128
          %s210 = scalar_lea.hbm %s0, %s209
          %s212 = sshll.u32 %s205, 4
          %s213 = int_to_ptr.vmem [resolvable:$true] %s212
          %215 = dma.hbm_to_vmem [thread:$0]  %s210, 128, %s213, %s202
        $region20: #{tpu_custom_call.1} parent=15 // pred_fallthru
          _
        // Predicated region
        $region21: #{tpu_custom_call.1} parent=15 // pred_check
          %p216 = pneg %p69
        $region22: #{tpu_custom_call.1} parent=15 // pred_check_branch
          %218 = sbr.rel (%p216) target = $region24
        $region23: #{tpu_custom_call.1} parent=15 // pred_region
          %s219 = sand.u32 %s23, 1
          %s220 = scalar_lea.sflag [#allocation6], %s219
          %s221 = sand.u32 %s59, 1
          %s222 = smul.addr %s221, 8
          %s223 = scalar_lea.vmem [#allocation5], %s222
          %s225 = ssub.s32 128, 128
          %226 = vsyncadd %s220, %s225
          %s227 = smul.addr %s23, 128
          %s228 = scalar_lea.hbm %s1, %s227
          %s230 = sshll.u32 %s223, 4
          %s231 = int_to_ptr.vmem [resolvable:$true] %s230
          %233 = dma.hbm_to_vmem [thread:$0]  %s228, 128, %s231, %s220
        $region24: #{tpu_custom_call.1} parent=15 // pred_fallthru
          _
        // Predicated region
        $region25: #{tpu_custom_call.1} parent=15 // pred_check
          %p234 = pneg %p95
        $region26: #{tpu_custom_call.1} parent=15 // pred_check_branch
          %236 = sbr.rel (%p234) target = $region28
        $region27: #{tpu_custom_call.1} parent=15 // pred_region
          %s237 = sand.u32 %s23, 1
          %s238 = scalar_lea.sflag [#allocation6], %s237
          %s239 = sand.u32 %s85, 1
          %s240 = smul.addr %s239, 8
          %s241 = scalar_lea.vmem [#allocation7], %s240
          %s243 = ssub.s32 128, 128
          %244 = vsyncadd %s238, %s243
          %s245 = smul.addr %s23, 128
          %s246 = scalar_lea.hbm %s2, %s245
          %s248 = sshll.u32 %s241, 4
          %s249 = int_to_ptr.vmem [resolvable:$true] %s248
          %251 = dma.hbm_to_vmem [thread:$0]  %s246, 128, %s249, %s238
        $region28: #{tpu_custom_call.1} parent=15 // pred_fallthru
          _
        // Predicated region
        $region29: #{tpu_custom_call.1} parent=15 // pred_check
          %p252 = pneg %p121
        $region30: #{tpu_custom_call.1} parent=15 // pred_check_branch
          %254 = sbr.rel (%p252) target = $region32
        $region31: #{tpu_custom_call.1} parent=15 // pred_region
          %s255 = sand.u32 %s23, 1
          %s256 = scalar_lea.sflag [#allocation9], %s255
          %s257 = sand.u32 %s111, 1
          %s258 = smul.addr %s257, 32
          %s259 = scalar_lea.vmem [#allocation8], %s258
          %s260 = smul.u32 4, %s23
          %s262 = ssub.s32 512, 512
          %263 = vsyncadd %s256, %s262
          %s264 = smul.addr %s260, 128
          %s265 = scalar_lea.hbm %s3, %s264
          %s266 = sshll.u32 %s259, 4
          %s267 = int_to_ptr.vmem [resolvable:$true] %s266
          %272 = dma.hbm_to_vmem [thread:$0]  %s265, 512, %s267, %s256, 128, 128, 8
        $region32: #{tpu_custom_call.1} parent=15 // pred_fallthru
          _
        // Predicated region
        $region33: #{tpu_custom_call.1} parent=15 // pred_check
          %p273 = pneg %p147
        $region34: #{tpu_custom_call.1} parent=15 // pred_check_branch
          %275 = sbr.rel (%p273) target = $region36
        $region35: #{tpu_custom_call.1} parent=15 // pred_region
          %s276 = sand.u32 %s23, 1
          %s277 = scalar_lea.sflag [#allocation9], %s276
          %s278 = sand.u32 %s137, 1
          %s279 = smul.addr %s278, 32
          %s280 = scalar_lea.vmem [#allocation10], %s279
          %s281 = smul.u32 4, %s23
          %s283 = ssub.s32 512, 512
          %284 = vsyncadd %s277, %s283
          %s285 = smul.addr %s281, 128
          %s286 = scalar_lea.hbm %s4, %s285
          %s287 = sshll.u32 %s280, 4
          %s288 = int_to_ptr.vmem [resolvable:$true] %s287
          %293 = dma.hbm_to_vmem [thread:$0]  %s286, 512, %s288, %s277, 128, 128, 8
        $region36: #{tpu_custom_call.1} parent=15 // pred_fallthru
          _
      $region16: #{tpu_custom_call.1} parent=5 // pred_fallthru
        _
      %p294 = scmp.le.s32.totalorder 1, %s23
      %p295 = scmp.lt.s32.totalorder %s23, 3
      %p296 = pnand %p294, %p295
      %p297 = pneg %p296
      // Predicated region
      $region37: #{tpu_custom_call.1} parent=5 // pred_check
        _
      $region38: #{tpu_custom_call.1} parent=5 // pred_check_branch
        %299 = sbr.rel (%p296) target = $region40
      $region39: #{tpu_custom_call.1} parent=5 // pred_region
        %s300 = ssub.s32 %s23, 1
        %s301 = sand.u32 %s36, 1
        %s302 = scalar_lea.sflag [#allocation3], %s301
        %s303 = sand.u32 %s36, 1
        %s304 = smul.addr %s303, 8
        %s305 = scalar_lea.vmem [#allocation2], %s304
        // Predicated region
        $region41: #{tpu_custom_call.1} parent=39 // pred_check
          %p306 = pneg %p49
        $region42: #{tpu_custom_call.1} parent=39 // pred_check_branch
          %308 = sbr.rel (%p306) target = $region44
        $region43: #{tpu_custom_call.1} parent=39 // pred_region
          %309 = dma.done %s302, 128
        $region44: #{tpu_custom_call.1} parent=39 // pred_fallthru
          _
        %s310 = sand.u32 %s28, 1
        %s311 = scalar_lea.sflag [#allocation6], %s310
        %s312 = sand.u32 %s62, 1
        %s313 = smul.addr %s312, 8
        %s314 = scalar_lea.vmem [#allocation5], %s313
        // Predicated region
        $region45: #{tpu_custom_call.1} parent=39 // pred_check
          %p315 = pneg %p75
        $region46: #{tpu_custom_call.1} parent=39 // pred_check_branch
          %317 = sbr.rel (%p315) target = $region48
        $region47: #{tpu_custom_call.1} parent=39 // pred_region
          %318 = dma.done %s311, 128
        $region48: #{tpu_custom_call.1} parent=39 // pred_fallthru
          _
        %s319 = sand.u32 %s28, 1
        %s320 = scalar_lea.sflag [#allocation6], %s319
        %s321 = sand.u32 %s88, 1
        %s322 = smul.addr %s321, 8
        %s323 = scalar_lea.vmem [#allocation7], %s322
        // Predicated region
        $region49: #{tpu_custom_call.1} parent=39 // pred_check
          %p324 = pneg %p101
        $region50: #{tpu_custom_call.1} parent=39 // pred_check_branch
          %326 = sbr.rel (%p324) target = $region52
        $region51: #{tpu_custom_call.1} parent=39 // pred_region
          %327 = dma.done %s320, 128
        $region52: #{tpu_custom_call.1} parent=39 // pred_fallthru
          _
        %s328 = sand.u32 %s28, 1
        %s329 = scalar_lea.sflag [#allocation9], %s328
        %s330 = sand.u32 %s114, 1
        %s331 = smul.addr %s330, 32
        %s332 = scalar_lea.vmem [#allocation8], %s331
        // Predicated region
        $region53: #{tpu_custom_call.1} parent=39 // pred_check
          %p333 = pneg %p127
        $region54: #{tpu_custom_call.1} parent=39 // pred_check_branch
          %335 = sbr.rel (%p333) target = $region56
        $region55: #{tpu_custom_call.1} parent=39 // pred_region
          %336 = dma.done %s329, 512
        $region56: #{tpu_custom_call.1} parent=39 // pred_fallthru
          _
        %s337 = sand.u32 %s28, 1
        %s338 = scalar_lea.sflag [#allocation9], %s337
        %s339 = sand.u32 %s140, 1
        %s340 = smul.addr %s339, 32
        %s341 = scalar_lea.vmem [#allocation10], %s340
        // Predicated region
        $region57: #{tpu_custom_call.1} parent=39 // pred_check
          %p342 = pneg %p153
        $region58: #{tpu_custom_call.1} parent=39 // pred_check_branch
          %344 = sbr.rel (%p342) target = $region60
        $region59: #{tpu_custom_call.1} parent=39 // pred_region
          %345 = dma.done %s338, 512
        $region60: #{tpu_custom_call.1} parent=39 // pred_fallthru
          _
        %s346 = sand.u32 %s36, 1
        %s347 = scalar_lea.sflag [#allocation3], %s346
        %s348 = sand.u32 %s36, 1
        %s349 = smul.addr %s348, 8
        %s350 = scalar_lea.vmem [#allocation2], %s349
        %p351 = pneg %p49
        %p352 = pneg %p46
        %s353 = sand.u32 %s28, 1
        %s354 = scalar_lea.sflag [#allocation6], %s353
        %s355 = sand.u32 %s62, 1
        %s356 = smul.addr %s355, 8
        %s357 = scalar_lea.vmem [#allocation5], %s356
        %p358 = pneg %p75
        %p359 = pneg %p72
        %s360 = sand.u32 %s28, 1
        %s361 = scalar_lea.sflag [#allocation6], %s360
        %s362 = sand.u32 %s88, 1
        %s363 = smul.addr %s362, 8
        %s364 = scalar_lea.vmem [#allocation7], %s363
        %p365 = pneg %p101
        %p366 = pneg %p98
        %s367 = sand.u32 %s28, 1
        %s368 = scalar_lea.sflag [#allocation9], %s367
        %s369 = sand.u32 %s114, 1
        %s370 = smul.addr %s369, 32
        %s371 = scalar_lea.vmem [#allocation8], %s370
        %p372 = pneg %p127
        %p373 = pneg %p124
        %s374 = sand.u32 %s28, 1
        %s375 = scalar_lea.sflag [#allocation9], %s374
        %s376 = sand.u32 %s140, 1
        %s377 = smul.addr %s376, 32
        %s378 = scalar_lea.vmem [#allocation10], %s377
        %p379 = pneg %p153
        %p380 = pneg %p150
        %p381 = pneg %p179
        %p382 = pneg %p176
        %s383 = sand.u32 %s166, 1
        %s384 = scalar_lea.sflag [#allocation4], %s383
        %s385 = sand.u32 %s166, 1
        %s386 = scalar_lea.vmem [#allocation11], %s385
        %s387 = smul.u32 4, %s28
        %s388 = smul.u32 4, %s28
        %v389 = vld [vmem:[%s305] sm:$0xff]
        %v390 = vld [vmem:[%s314] sm:$0xff]
        %v391 = vld [vmem:[%s323] sm:$0xff]
        %v392 = vsub.f32 %v389, %v390
        %v393 = vmul.f32 %v392, %v392
        %v394 = vmul.f32 %v393, 0.5
        %v395 = vmul.f32 %v391, 1.442695
        %v396 = vpow.pop %v395
        %v397 = vadd.f32 %v396, 1e-07
        %v398 = vrcp.pop %v397
        %v399 = vmul.f32 %v394, %v398
        %v400 = vmul.f32 %v391, 0.25
        %v401 = vadd.f32 %v399, %v400
        %v402 = vld [vmem:[%s332] sm:$0xff]
        %v403 = vld [vmem:[%s332 + $0x8] sm:$0xff]
        %v404 = vld [vmem:[%s332 + $0x10] sm:$0xff]
        %v405 = vld [vmem:[%s332 + $0x18] sm:$0xff]
        %v406 = vld [vmem:[%s341] sm:$0xff]
        %v407 = vld [vmem:[%s341 + $0x8] sm:$0xff]
        %v408 = vld [vmem:[%s341 + $0x10] sm:$0xff]
        %v409 = vld [vmem:[%s341 + $0x18] sm:$0xff]
        %v410 = vmul.f32 %v402, %v402
        %v411 = vmul.f32 %v403, %v403
        %v412 = vmul.f32 %v404, %v404
        %v413 = vmul.f32 %v405, %v405
        %v414 = vmul.f32 %v406, 1.442695
        %v415 = vpow.pop %v414
        %v416 = vmul.f32 %v407, 1.442695
        %v417 = vpow.pop %v416
        %v418 = vmul.f32 %v408, 1.442695
        %v419 = vpow.pop %v418
        %v420 = vmul.f32 %v409, 1.442695
        %v421 = vpow.pop %v420
        %v422 = vadd.f32 %v410, %v415
        %v423 = vadd.f32 %v411, %v417
        %v424 = vadd.f32 %v412, %v419
        %v425 = vadd.f32 %v413, %v421
        %v426 = vsub.f32 %v422, %v406
        %v427 = vsub.f32 %v423, %v407
        %v428 = vsub.f32 %v424, %v408
        %v429 = vsub.f32 %v425, %v409
        %v430 = vrot.slane %v401, 4
        %v431 = vadd.f32 %v401, %v430
        %v432 = vrot.slane %v431, 2
        %v433 = vadd.f32 %v431, %v432
        %v434 = vrot.slane %v433, 1
        %v435 = vadd.f32 %v433, %v434
        %v436 = vadd.f32 %v426, %v427
        %v437 = vadd.f32 %v436, %v428
        %v438 = vadd.f32 %v437, %v429
        %v439 = vrot.slane %v438, 4
        %v440 = vadd.f32 %v438, %v439
        %v441 = vrot.slane %v440, 2
        %v442 = vadd.f32 %v440, %v441
        %v443 = vrot.slane %v442, 1
        %v444 = vadd.f32 %v442, %v443
        %v445 = vmul.f32 %v444, 0.5
        %v446 = vadd.f32 %v435, %v445
        %447 = vst [vmem:[%s386] sm:$0x1] %v446
        %s448 = sand.u32 %s166, 1
        %s449 = scalar_lea.sflag [#allocation4], %s448
        %s450 = sand.u32 %s166, 1
        %s451 = scalar_lea.vmem [#allocation11], %s450
        // Predicated region
        $region61: #{tpu_custom_call.1} parent=39 // pred_check
          %p452 = pneg %p176
        $region62: #{tpu_custom_call.1} parent=39 // pred_check_branch
          %454 = sbr.rel (%p452) target = $region64
        $region63: #{tpu_custom_call.1} parent=39 // pred_region
          %s456 = ssub.s32 16, 16
          %457 = vsyncadd %s449, %s456
          %s458 = smul.addr %s28, 16
          %s459 = scalar_lea.hbm %s5, %s458
          %s461 = sshll.u32 %s451, 4
          %s462 = int_to_ptr.vmem [resolvable:$true] %s461
          %464 = dma.vmem_to_hbm [thread:$0]  %s462, 16, %s459, %s449
        $region64: #{tpu_custom_call.1} parent=39 // pred_fallthru
          _
      $region40: #{tpu_custom_call.1} parent=5 // pred_fallthru
        _
      %p465 = scmp.le.s32.totalorder 2, %s23
      // Predicated region
      $region65: #{tpu_custom_call.1} parent=5 // pred_check
        %p466 = pneg %p465
      $region66: #{tpu_custom_call.1} parent=5 // pred_check_branch
        %468 = sbr.rel (%p466) target = $region68
      $region67: #{tpu_custom_call.1} parent=5 // pred_region
        %s469 = ssub.s32 %s23, 2
        // Predicated region
        $region69: #{tpu_custom_call.1} parent=67 // pred_check
          %p470 = pneg %p182
        $region70: #{tpu_custom_call.1} parent=67 // pred_check_branch
          %472 = sbr.rel (%p470) target = $region72
        $region71: #{tpu_custom_call.1} parent=67 // pred_region
          %s473 = sand.u32 %s167, 1
          %s474 = scalar_lea.sflag [#allocation4], %s473
          %s475 = sand.u32 %s167, 1
          %s476 = scalar_lea.vmem [#allocation11], %s475
          %477 = dma.done %s474, 16
        $region72: #{tpu_custom_call.1} parent=67 // pred_fallthru
          _
      $region68: #{tpu_custom_call.1} parent=5 // pred_fallthru
        _
    $region6: #{tpu_custom_call.1} parent=1 // loop_footer
      %s27 = sadd.s32 1, %s23
    $region7: #{tpu_custom_call.1} parent=1 // loop_footer_branch
      %22 = sbr.rel target = $region3
    $region8: #{tpu_custom_call.1} parent=1 // loop_exit
      _
    %478 = vsyncpa [#allocation3], 1
    %s479 = scalar_lea.sflag [#allocation3], 1
    %480 = vsyncpa %s479, 1
    %481 = vsyncpa [#allocation6], 1
    %s482 = scalar_lea.sflag [#allocation6], 1
    %483 = vsyncpa %s482, 1
    %484 = vsyncpa [#allocation9], 1
    %s485 = scalar_lea.sflag [#allocation9], 1
    %486 = vsyncpa %s485, 1
    %487 = vsyncpa [#allocation4], 1
    %s488 = scalar_lea.sflag [#allocation4], 1
    %489 = vsyncpa %s488, 1

</llo_original>
